<compile_context>
chip_gen: v5e
topology: v5e:2x2
jax: 0.10.0
libtpu: 0.0.40
codegen_flags: <defaults>
</compile_context>

<pallas_src>
import jax
import jax.numpy as jnp
from jax.experimental import pallas as pl
from jax.experimental.pallas import tpu as pltpu


def _round_up(n, m):
    return ((n + m - 1) // m) * m


def _residual_linear_kernel(x_ref, w_ref, b_ref, o_ref):
    x = x_ref[...]                                     # (TM, D_in) activation tile
    # Canonical (M,K)x(K,N): weight already transposed to (D_in, D_out).
    y = jnp.dot(x, w_ref[...], preferred_element_type=jnp.float32)
    y = y + b_ref[...]                                 # bias is f32 (1, D_out)
    # Residual add in f32, single cast at the store.
    o_ref[...] = (x.astype(jnp.float32) + y).astype(o_ref.dtype)


def _device_kind():
    try:
        return jax.devices()[0].device_kind.lower()
    except Exception:
        return ""


def _is_v7x():
    return "v7" in _device_kind()


def _tpu_vmem_capacity_bytes():
    try:
        return int(pltpu.get_tpu_info().vmem_capacity_bytes)
    except Exception:
        pass
    return (64 << 20) if _is_v7x() else (128 << 20)    # v7x vs v5e/v6e


def residual_layer(x, weight, bias, *, tile_m=None, donate_x=False):
    """x: [B, D_in], weight: [D_out, D_in] (PyTorch nn.Linear layout), bias: [D_out]."""
    B, D_in = x.shape
    D_out, wk = weight.shape
    assert wk == D_in, "weight must be (out_dim, in_dim)"
    assert D_in == D_out, "residual add requires input_dim == output_dim"

    x_item = jnp.dtype(x.dtype).itemsize
    w_item = jnp.dtype(weight.dtype).itemsize

    v7x = _is_v7x()
    usable = int(_tpu_vmem_capacity_bytes() * 0.85)    # headroom for internal scratch

    # One-time relayout outside the grid, amortized over every batch tile.
    # (For repeated calls, store the weight pre-transposed and skip this.)
    w_t = weight.T                                     # (D_in, D_out)
    b_f32 = bias.astype(jnp.float32).reshape(1, D_out)

    # Batch tile: sublane-aligned, auto-shrunk to fit the per-generation budget.
    if tile_m is None:
        tile_m = 512 if v7x else 1024
    tm = max(8, min(_round_up(tile_m, 8), _round_up(B, 8)))

    def vmem_estimate(tm_, w_bufs):
        const = w_bufs * (D_in * D_out * w_item + D_out * 4)          # weight + f32 bias
        stream = 2 * tm_ * D_in * x_item + 2 * tm_ * D_out * x_item   # x + out (dbl-buffered)
        return const + stream

    while tm > 8 and vmem_estimate(tm, 1) > usable:
        tm = max(8, _round_up(tm // 2, 8))

    grid = (pl.cdiv(B, tm),)    # ragged last block is masked by Pallas (no jnp.pad)

    cost = pl.CostEstimate(
        flops=2 * B * D_in * D_out,
        transcendentals=0,
        bytes_accessed=((B * D_in + B * D_out) * x_item
                        + D_out * D_in * w_item + D_out * 4),
    )

    extra_kwargs = {}
    if donate_x:
        extra_kwargs["input_output_aliases"] = {0: 0}

    def make_call(buffered_const, semantics):
        const_kwargs = {"pipeline_mode": pl.Buffered(1)} if buffered_const else {}
        est = vmem_estimate(tm, 1 if buffered_const else 2)
        vmem_limit = int(min(usable, max(est + (4 << 20), 16 << 20)))
        return pl.pallas_call(
            _residual_linear_kernel,
            out_shape=jax.ShapeDtypeStruct((B, D_out), x.dtype),
            grid_spec=pltpu.PrefetchScalarGridSpec(
                num_scalar_prefetch=0,
                grid=grid,
                in_specs=[
                    pl.BlockSpec((tm, D_in), lambda i: (i, 0)),        # streamed x tile
                    pl.BlockSpec((D_in, D_out), lambda i: (0, 0),      # resident weight
                                 **const_kwargs),
                    pl.BlockSpec((1, D_out), lambda i: (0, 0),         # resident bias
                                 **const_kwargs),
                ],
                out_specs=pl.BlockSpec((tm, D_out), lambda i: (i, 0)),
            ),
            compiler_params=pltpu.CompilerParams(
                dimension_semantics=semantics,
                vmem_limit_bytes=vmem_limit,
            ),
            cost_estimate=cost,
            **extra_kwargs,
        )

    # Preferred config first; fall back if a knob is unsupported on this jax/chip.
    attempts = []
    if v7x:
        attempts.append((True, (pltpu.CORE_PARALLEL,)))
    attempts.append((True, (pltpu.PARALLEL,)))
    attempts.append((False, ("parallel",)))

    last_err = None
    for buffered_const, semantics in attempts:
        try:
            return make_call(buffered_const, semantics)(x, w_t, b_f32)
        except Exception as e:  # fall back to a safer configuration
            last_err = e
    raise last_err


if __name__ == "__main__":
    key = jax.random.PRNGKey(0)
    k_x, k_w, k_b = jax.random.split(key, 3)

    # Small demo: lane-dense feature dim (128); batch=200 with tile_m=128 gives
    # a 2-step grid whose last tile is ragged, exercising the no-pad,
    # edge-masked path.
    batch, dim = 200, 128

    x = jax.random.normal(k_x, (batch, dim), dtype=jnp.float32)

    # PyTorch-like init: U(-1/sqrt(fan_in), 1/sqrt(fan_in)), weight in (out, in).
    bound = 1.0 / jnp.sqrt(dim)
    weight = jax.random.uniform(k_w, (dim, dim), jnp.float32, -bound, bound)
    bias = jax.random.uniform(k_b, (dim,), jnp.float32, -bound, bound)

    out = residual_layer(x, weight, bias, tile_m=128)
    out = jax.block_until_ready(out)

    # Reference in plain JAX (matches PyTorch: x + x @ W^T + b).
    ref = x + (x @ weight.T + bias)
    assert out.shape == ref.shape
    assert jnp.allclose(out, ref, atol=1e-5, rtol=1e-5), "mismatch vs reference"

    print("KERNEL_OK")
</pallas_src>

<mosaic_0001>
module attributes {stable_mosaic.version = 11 : i64} {
  func.func @_residual_linear_kernel(%arg0: i32, %arg1: memref<128x128xf32, #tpu.memory_space<vmem>>, %arg2: memref<128x128xf32, #tpu.memory_space<vmem>>, %arg3: memref<1x128xf32, #tpu.memory_space<vmem>>, %arg4: memref<128x128xf32, #tpu.memory_space<vmem>>) attributes {dimension_semantics = [#tpu.dimension_semantics<parallel>], iteration_bounds = array<i64: 2>, scalar_prefetch = 0 : i64, scratch_operands = 0 : i64, tpu.core_type = #tpu.core_type<tc>, window_params = [{transform_indices = @transform_0, window_bounds = array<i64: 128, 128>}, {pipeline_mode = #tpu.pipeline_mode<synchronous>, transform_indices = @transform_1, window_bounds = array<i64: 128, 128>}, {pipeline_mode = #tpu.pipeline_mode<synchronous>, transform_indices = @transform_2, window_bounds = array<i64: 1, 128>}, {transform_indices = @transform_3, window_bounds = array<i64: 128, 128>}]} {
    %c0 = arith.constant 0 : index
    %c0_0 = arith.constant 0 : index
    %0 = vector.load %arg1[%c0, %c0_0] : memref<128x128xf32, #tpu.memory_space<vmem>>, vector<128x128xf32>
    %c0_1 = arith.constant 0 : index
    %c0_2 = arith.constant 0 : index
    %1 = vector.load %arg2[%c0_1, %c0_2] : memref<128x128xf32, #tpu.memory_space<vmem>>, vector<128x128xf32>
    %cst = arith.constant dense<0.000000e+00> : vector<128x128xf32>
    %2 = tpu.matmul %0, %1, %cst {dimension_numbers = #tpu.dot_dimension_numbers<[1], [0], [0], [1], [0, 0, 1, 1], [], []>} : vector<128x128xf32>, vector<128x128xf32>, vector<128x128xf32> -> vector<128x128xf32>
    %c0_3 = arith.constant 0 : index
    %c0_4 = arith.constant 0 : index
    %3 = vector.load %arg3[%c0_3, %c0_4] : memref<1x128xf32, #tpu.memory_space<vmem>>, vector<1x128xf32>
    %4 = vector.broadcast %3 : vector<1x128xf32> to vector<128x128xf32>
    %5 = arith.addf %2, %4 : vector<128x128xf32>
    %6 = arith.addf %0, %5 : vector<128x128xf32>
    %c0_5 = arith.constant 0 : index
    %c0_6 = arith.constant 0 : index
    %7 = vector.load %arg4[%c0_5, %c0_6] : memref<128x128xf32, #tpu.memory_space<vmem>>, vector<128x128xf32>
    tpu.vector_store %arg4[%c0_5, %c0_6], %6 {strides = array<i32>} : memref<128x128xf32, #tpu.memory_space<vmem>>, vector<128x128xf32>,
    return
  }
  func.func @transform_0(%arg0: i32) -> (i32, i32) {
    %c0_i32 = arith.constant 0 : i32
    %c0_i32_0 = arith.constant 0 : i32
    return %arg0, %c0_i32 : i32, i32
  }
  func.func @transform_1(%arg0: i32) -> (i32, i32) {
    %c0_i32 = arith.constant 0 : i32
    %c0_i32_0 = arith.constant 0 : i32
    %c0_i32_1 = arith.constant 0 : i32
    return %c0_i32, %c0_i32_0 : i32, i32
  }
  func.func @transform_2(%arg0: i32) -> (i32, i32) {
    %c0_i32 = arith.constant 0 : i32
    %c0_i32_0 = arith.constant 0 : i32
    %c0_i32_1 = arith.constant 0 : i32
    return %c0_i32, %c0_i32_0 : i32, i32
  }
  func.func @transform_3(%arg0: i32) -> (i32, i32) {
    %c0_i32 = arith.constant 0 : i32
    %c0_i32_0 = arith.constant 0 : i32
    return %arg0, %c0_i32 : i32, i32
  }
}

module attributes {stable_mosaic.version = 11 : i64} {
  func.func @_residual_linear_kernel(%arg0: i32, %arg1: memref<128x128xf32, #tpu.memory_space<vmem>>, %arg2: memref<128x128xf32, #tpu.memory_space<vmem>>, %arg3: memref<1x128xf32, #tpu.memory_space<vmem>>, %arg4: memref<128x128xf32, #tpu.memory_space<vmem>>) attributes {dimension_semantics = [#tpu.dimension_semantics<parallel>], iteration_bounds = array<i64: 2>, scalar_prefetch = 0 : i64, scratch_operands = 0 : i64, tpu.core_type = #tpu.core_type<tc>, window_params = [{transform_indices = @transform_0, window_bounds = array<i64: 128, 128>}, {pipeline_mode = #tpu.pipeline_mode<synchronous>, transform_indices = @transform_1, window_bounds = array<i64: 128, 128>}, {pipeline_mode = #tpu.pipeline_mode<synchronous>, transform_indices = @transform_2, window_bounds = array<i64: 1, 128>}, {transform_indices = @transform_3, window_bounds = array<i64: 128, 128>}]} {
    %c0 = arith.constant 0 : index
    %c0_0 = arith.constant 0 : index
    %0 = vector.load %arg1[%c0, %c0_0] : memref<128x128xf32, #tpu.memory_space<vmem>>, vector<128x128xf32>
    %c0_1 = arith.constant 0 : index
    %c0_2 = arith.constant 0 : index
    %1 = vector.load %arg2[%c0_1, %c0_2] : memref<128x128xf32, #tpu.memory_space<vmem>>, vector<128x128xf32>
    %cst = arith.constant dense<0.000000e+00> : vector<128x128xf32>
    %2 = tpu.matmul %0, %1, %cst {dimension_numbers = #tpu.dot_dimension_numbers<[1], [0], [0], [1], [0, 0, 1, 1], [], []>} : vector<128x128xf32>, vector<128x128xf32>, vector<128x128xf32> -> vector<128x128xf32>
    %c0_3 = arith.constant 0 : index
    %c0_4 = arith.constant 0 : index
    %3 = vector.load %arg3[%c0_3, %c0_4] : memref<1x128xf32, #tpu.memory_space<vmem>>, vector<1x128xf32>
    %4 = vector.broadcast %3 : vector<1x128xf32> to vector<128x128xf32>
    %5 = arith.addf %2, %4 : vector<128x128xf32>
    %6 = arith.addf %0, %5 : vector<128x128xf32>
    %c0_5 = arith.constant 0 : index
    %c0_6 = arith.constant 0 : index
    %7 = vector.load %arg4[%c0_5, %c0_6] : memref<128x128xf32, #tpu.memory_space<vmem>>, vector<128x128xf32>
    tpu.vector_store %arg4[%c0_5, %c0_6], %6 {strides = array<i32>} : memref<128x128xf32, #tpu.memory_space<vmem>>, vector<128x128xf32>,
    return
  }
  func.func @transform_0(%arg0: i32) -> (i32, i32) {
    %c0_i32 = arith.constant 0 : i32
    %c0_i32_0 = arith.constant 0 : i32
    return %arg0, %c0_i32 : i32, i32
  }
  func.func @transform_1(%arg0: i32) -> (i32, i32) {
    %c0_i32 = arith.constant 0 : i32
    %c0_i32_0 = arith.constant 0 : i32
    %c0_i32_1 = arith.constant 0 : i32
    return %c0_i32, %c0_i32_0 : i32, i32
  }
  func.func @transform_2(%arg0: i32) -> (i32, i32) {
    %c0_i32 = arith.constant 0 : i32
    %c0_i32_0 = arith.constant 0 : i32
    %c0_i32_1 = arith.constant 0 : i32
    return %c0_i32, %c0_i32_0 : i32, i32
  }
  func.func @transform_3(%arg0: i32) -> (i32, i32) {
    %c0_i32 = arith.constant 0 : i32
    %c0_i32_0 = arith.constant 0 : i32
    return %arg0, %c0_i32 : i32, i32
  }
}

</mosaic_0001>

<llo_original>
// kernel: tpu_custom_call.1
$region0: #{tpu_custom_call.1}
  #allocation0 [shape = 'u32[]', space=smem, size = 0x4, offset = 0x4, fixed_abs, tag = 'smem constant byte address 0x4 - core index']
  #allocation1 [shape = 'u32[72,128]{1,0:T(1,128)}', space=vmem, size = 0x9000, scoped, tag = 'internal scratch']
  %s0 = inlined_call_operand.hbm [shape: f32[200,128], index: 0, kind: input, shape index: {}]
  %s1 = inlined_call_operand.hbm [shape: f32[128,128], index: 1, kind: input, shape index: {}]
  %s2 = inlined_call_operand.vmem [shape: f32[1,128], index: 2, kind: input, shape index: {}]
  %s3 = inlined_call_operand.hbm [shape: f32[200,128], index: 3, kind: output, shape index: {}]
  %s4 = sld [smem:[#allocation0]]
  $region53: #{tpu_custom_call.1} parent=0
    _
  %s6 = ssub.s32 1, %s4
  %s7 = scalar_select 0, %s6, %s4
  $region1: #{tpu_custom_call.1} parent=0
    #allocation2 [shape = 'u8[131072]{0}', space=vmem, size = 0x20000, scoped, tag = 'input window, operand 0']
    #allocation3 [shape = 's32[2]{0}', space=sflag, size = 0x8, scoped, tag = 'scoped memory for tpu_custom_call.1']
    #allocation4 [shape = 's32[2]{0}', space=sflag, size = 0x8, scoped, tag = 'scoped memory for tpu_custom_call.1']
    #allocation5 [shape = 'u8[65536]{0}', space=vmem, size = 0x10000, scoped, tag = 'input window, operand 1, single buffered']
    #allocation6 [shape = 's32[1]{0}', space=sflag, size = 0x4, scoped, tag = 'scoped memory for tpu_custom_call.1']
    #allocation7 [shape = 'u8[131072]{0}', space=vmem, size = 0x20000, scoped, tag = 'output window, operand 0']
    %8 = vsyncpa [#allocation3], 0
    %s9 = scalar_lea.sflag [#allocation3], 1
    %10 = vsyncpa %s9, 0
    %11 = vsyncpa [#allocation6], 0
    %12 = vsyncpa [#allocation4], 0
    %s13 = scalar_lea.sflag [#allocation4], 1
    %14 = vsyncpa %s13, 0
    loop: start=0, step=1, limit=4
    $region2: #{tpu_custom_call.1} parent=1 // loop_pre_header
      _
    $region3: #{tpu_custom_call.1} parent=1 // loop_header
      %s16 = sphi 0, %s20
      %p17 = scmp.ge.s32.totalorder %s16, 4
      %s26 = sphi 0, %s28
      %s29 = sphi 0, %s26
      %s30 = sphi 0, %s29
      %s46 = sphi 0, %s30
      %s50 = sphi 0, %s50
      %s52 = sphi 0, %s50
      %s53 = sphi 0, %s52
      %s67 = sphi 0, %s53
      %s71 = sphi 0, %s71
      %s73 = sphi 0, %s71
      %s74 = sphi 0, %s73
      %s88 = sphi 0, %s74
      %s94 = sphi 0, %s96
      %s97 = sphi 0, %s94
      %s98 = sphi 0, %s97
      %s114 = sphi 0, %s98
    $region4: #{tpu_custom_call.1} parent=1 // loop_header_branch
      %19 = sbr.rel (%p17) target = $region8
    $region5: #{tpu_custom_call.1} parent=1 // loop_body
      %s21 = ssub.s32 %s16, 1
      %s22 = ssub.s32 %s16, 2
      %s23 = sadd.s32 %s16, 1
      %s24 = ssub.s32 %s16, %s23
      %p25 = scmp.eq.s32.totalorder %s24, 0
      %s27 = sadd.s32 %s26, 1
      %s28 = scalar_select %p25, %s26, %s27
      %p31 = pneg %p25
      %p32 = scmp.eq.s32.totalorder %s16, 1
      %p33 = por %p31, %p32
      %p34 = scmp.ne.s32.totalorder %s26, %s29
      %p35 = scmp.eq.s32.totalorder %s16, 0
      %p36 = por %p34, %p35
      %p37 = scmp.ne.s32.totalorder %s26, %s29
      %p38 = scmp.eq.s32.totalorder %s21, 1
      %p39 = por %p37, %p38
      %p40 = scmp.ne.s32.totalorder %s29, %s30
      %p41 = scmp.eq.s32.totalorder %s21, 0
      %p42 = por %p40, %p41
      %p43 = scmp.ne.s32.totalorder %s29, %s30
      %p44 = scmp.eq.s32.totalorder %s22, 1
      %p45 = por %p43, %p44
      %p47 = scmp.ne.s32.totalorder %s30, %s46
      %p48 = scmp.eq.s32.totalorder %s22, 0
      %p49 = por %p47, %p48
      %s51 = sadd.s32 %s50, 1
      %p54 = scmp.eq.s32.totalorder %s16, 1
      %p55 = scmp.ne.s32.totalorder %s50, %s52
      %p56 = scmp.eq.s32.totalorder %s16, 0
      %p57 = por %p55, %p56
      %p58 = scmp.ne.s32.totalorder %s50, %s52
      %p59 = scmp.eq.s32.totalorder %s21, 1
      %p60 = por %p58, %p59
      %p61 = scmp.ne.s32.totalorder %s52, %s53
      %p62 = scmp.eq.s32.totalorder %s21, 0
      %p63 = por %p61, %p62
      %p64 = scmp.ne.s32.totalorder %s52, %s53
      %p65 = scmp.eq.s32.totalorder %s22, 1
      %p66 = por %p64, %p65
      %p68 = scmp.ne.s32.totalorder %s53, %s67
      %p69 = scmp.eq.s32.totalorder %s22, 0
      %p70 = por %p68, %p69
      %s72 = sadd.s32 %s71, 1
      %p75 = scmp.eq.s32.totalorder %s16, 1
      %p76 = scmp.ne.s32.totalorder %s71, %s73
      %p77 = scmp.eq.s32.totalorder %s16, 0
      %p78 = por %p76, %p77
      %p79 = scmp.ne.s32.totalorder %s71, %s73
      %p80 = scmp.eq.s32.totalorder %s21, 1
      %p81 = por %p79, %p80
      %p82 = scmp.ne.s32.totalorder %s73, %s74
      %p83 = scmp.eq.s32.totalorder %s21, 0
      %p84 = por %p82, %p83
      %p85 = scmp.ne.s32.totalorder %s73, %s74
      %p86 = scmp.eq.s32.totalorder %s22, 1
      %p87 = por %p85, %p86
      %p89 = scmp.ne.s32.totalorder %s74, %s88
      %p90 = scmp.eq.s32.totalorder %s22, 0
      %p91 = por %p89, %p90
      %s92 = ssub.s32 %s16, %s23
      %p93 = scmp.eq.s32.totalorder %s92, 0
      %s95 = sadd.s32 %s94, 1
      %s96 = scalar_select %p93, %s94, %s95
      %p99 = pneg %p93
      %p100 = scmp.eq.s32.totalorder %s16, 1
      %p101 = por %p99, %p100
      %p102 = scmp.ne.s32.totalorder %s94, %s97
      %p103 = scmp.eq.s32.totalorder %s16, 0
      %p104 = por %p102, %p103
      %p105 = scmp.ne.s32.totalorder %s94, %s97
      %p106 = scmp.eq.s32.totalorder %s21, 1
      %p107 = por %p105, %p106
      %p108 = scmp.ne.s32.totalorder %s97, %s98
      %p109 = scmp.eq.s32.totalorder %s21, 0
      %p110 = por %p108, %p109
      %p111 = scmp.ne.s32.totalorder %s97, %s98
      %p112 = scmp.eq.s32.totalorder %s22, 1
      %p113 = por %p111, %p112
      %p115 = scmp.ne.s32.totalorder %s98, %s114
      %p116 = scmp.eq.s32.totalorder %s22, 0
      %p117 = por %p115, %p116
      %p118 = scmp.le.s32.totalorder 1, %s16
      %p119 = scmp.lt.s32.totalorder %s16, 3
      %p120 = pnand %p118, %p119
      %p121 = pneg %p120
      // Predicated region
      $region9: #{tpu_custom_call.1} parent=5 // pred_check
        _
      $region10: #{tpu_custom_call.1} parent=5 // pred_check_branch
        %123 = sbr.rel (%p120) target = $region12
      $region11: #{tpu_custom_call.1} parent=5 // pred_region
        %s124 = ssub.s32 %s16, 1
        // Predicated region
        $region13: #{tpu_custom_call.1} parent=11 // pred_check
          %p125 = pneg %p63
        $region14: #{tpu_custom_call.1} parent=11 // pred_check_branch
          %127 = sbr.rel (%p125) target = $region16
        $region15: #{tpu_custom_call.1} parent=11 // pred_region
          %129 = vsyncadd [#allocation6], 0
          %s130 = sshll.u32 %s1, 4
          %s131 = int_to_ptr.hbm [resolvable:$true] %s130
          %s132 = sshll.u32 [#allocation5], 4
          %s133 = int_to_ptr.vmem [resolvable:$true] %s132
          %138 = dma.hbm_to_vmem [thread:$0]  %s131, 2048, %s133, [#allocation6], 128, 128, 8
        $region16: #{tpu_custom_call.1} parent=11 // pred_fallthru
          _
        // Predicated region
        $region17: #{tpu_custom_call.1} parent=11 // pred_check
          %p139 = pneg %p84
        $region18: #{tpu_custom_call.1} parent=11 // pred_check_branch
          %141 = sbr.rel (%p139) target = $region20
        $region19: #{tpu_custom_call.1} parent=11 // pred_region
          _
        $region20: #{tpu_custom_call.1} parent=11 // pred_fallthru
          _
      $region12: #{tpu_custom_call.1} parent=5 // pred_fallthru
        _
      %p142 = scmp.lt.s32.totalorder %s16, 2
      // Predicated region
      $region21: #{tpu_custom_call.1} parent=5 // pred_check
        %p143 = pneg %p142
      $region22: #{tpu_custom_call.1} parent=5 // pred_check_branch
        %145 = sbr.rel (%p143) target = $region24
      $region23: #{tpu_custom_call.1} parent=5 // pred_region
        // Predicated region
        $region25: #{tpu_custom_call.1} parent=23 // pred_check
          %p146 = pneg %p36
        $region26: #{tpu_custom_call.1} parent=23 // pred_check_branch
          %148 = sbr.rel (%p146) target = $region28
        $region27: #{tpu_custom_call.1} parent=23 // pred_region
          %s149 = sand.u32 %s26, 1
          %s150 = scalar_lea.sflag [#allocation3], %s149
          %s151 = sand.u32 %s26, 1
          %s152 = smul.addr %s151, 128
          %s153 = scalar_lea.vmem [#allocation2], %s152
          %s154 = smul.u32 16, %s16
          %s155 = ssub.s32 25, %s154
          %p156 = scmp.lt.s32.totalorder %s155, 16
          %s157 = scalar_select %p156, %s155, 16
          %s158 = smul.u32 8, %s157
          %s159 = ssub.s32 128, %s158
          %s160 = sshll.u32 %s159, 4
          %161 = vsyncadd %s150, %s160
          %p162 = scmp.ne.s32.totalorder 0, %s158
          %s163 = smul.addr %s154, 8
          %s164 = scalar_lea.hbm %s0, %s163
          %s165 = smul.u32 8, %s157
          %s166 = sshll.u32 %s164, 4
          %s167 = int_to_ptr.hbm [resolvable:$true] %s166
          %s168 = sshll.u32 %s153, 4
          %s169 = int_to_ptr.vmem [resolvable:$true] %s168
          %s170 = sshll.u32 %s165, 4
          %174 = dma.hbm_to_vmem [thread:$0]  (%p162), %s167, %s170, %s169, %s150, 128, 128, 8
        $region28: #{tpu_custom_call.1} parent=23 // pred_fallthru
          _
      $region24: #{tpu_custom_call.1} parent=5 // pred_fallthru
        _
      %p175 = scmp.le.s32.totalorder 1, %s16
      %p176 = scmp.lt.s32.totalorder %s16, 3
      %p177 = pnand %p175, %p176
      %p178 = pneg %p177
      // Predicated region
      $region29: #{tpu_custom_call.1} parent=5 // pred_check
        _
      $region30: #{tpu_custom_call.1} parent=5 // pred_check_branch
        %180 = sbr.rel (%p177) target = $region32
      $region31: #{tpu_custom_call.1} parent=5 // pred_region
        %s181 = ssub.s32 %s16, 1
        %s182 = sand.u32 %s29, 1
        %s183 = scalar_lea.sflag [#allocation3], %s182
        %s184 = sand.u32 %s29, 1
        %s185 = smul.addr %s184, 128
        %s186 = scalar_lea.vmem [#allocation2], %s185
        // Predicated region
        $region33: #{tpu_custom_call.1} parent=31 // pred_check
          %p187 = pneg %p42
        $region34: #{tpu_custom_call.1} parent=31 // pred_check_branch
          %189 = sbr.rel (%p187) target = $region36
        $region35: #{tpu_custom_call.1} parent=31 // pred_region
          %191 = dma.done %s183, 2048
        $region36: #{tpu_custom_call.1} parent=31 // pred_fallthru
          _
        // Predicated region
        $region37: #{tpu_custom_call.1} parent=31 // pred_check
          %p192 = pneg %p63
        $region38: #{tpu_custom_call.1} parent=31 // pred_check_branch
          %194 = sbr.rel (%p192) target = $region40
        $region39: #{tpu_custom_call.1} parent=31 // pred_region
          %196 = dma.done [#allocation6], 2048
        $region40: #{tpu_custom_call.1} parent=31 // pred_fallthru
          _
        %s197 = sand.u32 %s29, 1
        %s198 = scalar_lea.sflag [#allocation3], %s197
        %s199 = sand.u32 %s29, 1
        %s200 = smul.addr %s199, 128
        %s201 = scalar_lea.vmem [#allocation2], %s200
        %p202 = pneg %p42
        %p203 = pneg %p39
        %p204 = pneg %p63
        %p205 = pneg %p60
        %p206 = pneg %p84
        %p207 = pneg %p81
        %p208 = pneg %p110
        %p209 = pneg %p107
        %s210 = sand.u32 %s97, 1
        %s211 = scalar_lea.sflag [#allocation4], %s210
        %s212 = sand.u32 %s97, 1
        %s213 = smul.addr %s212, 128
        %s214 = scalar_lea.vmem [#allocation7], %s213
        %s215 = smul.u32 16, %s21
        %s216 = ssub.s32 25, %s215
        %p217 = scmp.lt.s32.totalorder %s216, 16
        %s218 = scalar_select %p217, %s216, 16
        %s219 = smul.u32 8, %s218
        %s220 = smul.u32 16, %s21
        %s221 = ssub.s32 25, %s220
        %p222 = scmp.lt.s32.totalorder %s221, 16
        %s223 = scalar_select %p222, %s221, 16
        %s224 = smul.u32 8, %s223
        %v225 = vld [vmem:[%s186] sm:$0xff]
        %v226 = vld [vmem:[%s186 + $0x8] sm:$0xff]
        %v227 = vld [vmem:[%s186 + $0x10] sm:$0xff]
        %v228 = vld [vmem:[%s186 + $0x18] sm:$0xff]
        %v229 = vld [vmem:[%s186 + $0x20] sm:$0xff]
        %v230 = vld [vmem:[%s186 + $0x28] sm:$0xff]
        %v231 = vld [vmem:[%s186 + $0x30] sm:$0xff]
        %v232 = vld [vmem:[%s186 + $0x38] sm:$0xff]
        %v233 = vld [vmem:[%s186 + $0x40] sm:$0xff]
        %v234 = vld [vmem:[%s186 + $0x48] sm:$0xff]
        %v235 = vld [vmem:[%s186 + $0x50] sm:$0xff]
        %v236 = vld [vmem:[%s186 + $0x58] sm:$0xff]
        %v237 = vld [vmem:[%s186 + $0x60] sm:$0xff]
        %v238 = vld [vmem:[%s186 + $0x68] sm:$0xff]
        %v239 = vld [vmem:[%s186 + $0x70] sm:$0xff]
        %v240 = vld [vmem:[%s186 + $0x78] sm:$0xff]
        %v241 = vld [vmem:[#allocation5] sm:$0xff]
        %v242 = vld [vmem:[#allocation5 + $0x8] sm:$0xff]
        %v243 = vld [vmem:[#allocation5 + $0x10] sm:$0xff]
        %v244 = vld [vmem:[#allocation5 + $0x18] sm:$0xff]
        %v245 = vld [vmem:[#allocation5 + $0x20] sm:$0xff]
        %v246 = vld [vmem:[#allocation5 + $0x28] sm:$0xff]
        %v247 = vld [vmem:[#allocation5 + $0x30] sm:$0xff]
        %v248 = vld [vmem:[#allocation5 + $0x38] sm:$0xff]
        %v249 = vld [vmem:[#allocation5 + $0x40] sm:$0xff]
        %v250 = vld [vmem:[#allocation5 + $0x48] sm:$0xff]
        %v251 = vld [vmem:[#allocation5 + $0x50] sm:$0xff]
        %v252 = vld [vmem:[#allocation5 + $0x58] sm:$0xff]
        %v253 = vld [vmem:[#allocation5 + $0x60] sm:$0xff]
        %v254 = vld [vmem:[#allocation5 + $0x68] sm:$0xff]
        %v255 = vld [vmem:[#allocation5 + $0x70] sm:$0xff]
        %v256 = vld [vmem:[#allocation5 + $0x78] sm:$0xff]
        %v257 = vld [vmem:[%s2] sm:$0x1]
        %v259 = vperm.slane %v257, 0
        %261 = vmatpush.msra.mxu0 %v256
        %262 = vmatpush.msra.mxu0 %v255
        %263 = vmatpush.msra.mxu0 %v254
        %264 = vmatpush.msra.mxu0 %v253
        %265 = vmatpush.msra.mxu0 %v252
        %266 = vmatpush.msra.mxu0 %v251
        %267 = vmatpush.msra.mxu0 %v250
        %268 = vmatpush.msra.mxu0 %v249
        %269 = vmatpush.msra.mxu0 %v248
        %270 = vmatpush.msra.mxu0 %v247
        %271 = vmatpush.msra.mxu0 %v246
        %272 = vmatpush.msra.mxu0 %v245
        %273 = vmatpush.msra.mxu0 %v244
        %274 = vmatpush.msra.mxu0 %v243
        %275 = vmatpush.msra.mxu0 %v242
        %276 = vmatpush.msra.mxu0 %v241
        %277 = vmatmul.f32.gmra.mxu0 %v225
        %v278 = vpop.f32.mrf.mxu0
        %v279 = vadd.f32 %v259, %v278
        %280 = vmatmul.f32.gmra.mxu0 %v226
        %v281 = vpop.f32.mrf.mxu0
        %v282 = vadd.f32 %v259, %v281
        %283 = vmatmul.f32.gmra.mxu0 %v227
        %v284 = vpop.f32.mrf.mxu0
        %v285 = vadd.f32 %v259, %v284
        %286 = vmatmul.f32.gmra.mxu0 %v228
        %v287 = vpop.f32.mrf.mxu0
        %v288 = vadd.f32 %v259, %v287
        %289 = vmatmul.f32.gmra.mxu0 %v229
        %v290 = vpop.f32.mrf.mxu0
        %v291 = vadd.f32 %v259, %v290
        %292 = vmatmul.f32.gmra.mxu0 %v230
        %v293 = vpop.f32.mrf.mxu0
        %v294 = vadd.f32 %v259, %v293
        %295 = vmatmul.f32.gmra.mxu0 %v231
        %v296 = vpop.f32.mrf.mxu0
        %v297 = vadd.f32 %v259, %v296
        %298 = vmatmul.f32.gmra.mxu0 %v232
        %v299 = vpop.f32.mrf.mxu0
        %v300 = vadd.f32 %v259, %v299
        %301 = vmatmul.f32.gmra.mxu0 %v233
        %v302 = vpop.f32.mrf.mxu0
        %v303 = vadd.f32 %v259, %v302
        %304 = vmatmul.f32.gmra.mxu0 %v234
        %v305 = vpop.f32.mrf.mxu0
        %v306 = vadd.f32 %v259, %v305
        %307 = vmatmul.f32.gmra.mxu0 %v235
        %v308 = vpop.f32.mrf.mxu0
        %v309 = vadd.f32 %v259, %v308
        %310 = vmatmul.f32.gmra.mxu0 %v236
        %v311 = vpop.f32.mrf.mxu0
        %v312 = vadd.f32 %v259, %v311
        %313 = vmatmul.f32.gmra.mxu0 %v237
        %v314 = vpop.f32.mrf.mxu0
        %v315 = vadd.f32 %v259, %v314
        %316 = vmatmul.f32.gmra.mxu0 %v238
        %v317 = vpop.f32.mrf.mxu0
        %v318 = vadd.f32 %v259, %v317
        %319 = vmatmul.f32.gmra.mxu0 %v239
        %v320 = vpop.f32.mrf.mxu0
        %v321 = vadd.f32 %v259, %v320
        %322 = vmatmul.f32.gmra.mxu0 %v240
        %v323 = vpop.f32.mrf.mxu0
        %v324 = vadd.f32 %v259, %v323
        %325 = vdwg.mxu0
        %v326 = vadd.f32 %v225, %v279
        %v327 = vadd.f32 %v226, %v282
        %v328 = vadd.f32 %v227, %v285
        %v329 = vadd.f32 %v228, %v288
        %v330 = vadd.f32 %v229, %v291
        %v331 = vadd.f32 %v230, %v294
        %v332 = vadd.f32 %v231, %v297
        %v333 = vadd.f32 %v232, %v300
        %v334 = vadd.f32 %v233, %v303
        %v335 = vadd.f32 %v234, %v306
        %v336 = vadd.f32 %v235, %v309
        %v337 = vadd.f32 %v236, %v312
        %v338 = vadd.f32 %v237, %v315
        %v339 = vadd.f32 %v238, %v318
        %v340 = vadd.f32 %v239, %v321
        %v341 = vadd.f32 %v240, %v324
        %342 = vst [vmem:[%s214] sm:$0xff] %v326
        %343 = vst [vmem:[%s214 + $0x8] sm:$0xff] %v327
        %344 = vst [vmem:[%s214 + $0x10] sm:$0xff] %v328
        %345 = vst [vmem:[%s214 + $0x18] sm:$0xff] %v329
        %346 = vst [vmem:[%s214 + $0x20] sm:$0xff] %v330
        %347 = vst [vmem:[%s214 + $0x28] sm:$0xff] %v331
        %348 = vst [vmem:[%s214 + $0x30] sm:$0xff] %v332
        %349 = vst [vmem:[%s214 + $0x38] sm:$0xff] %v333
        %350 = vst [vmem:[%s214 + $0x40] sm:$0xff] %v334
        %351 = vst [vmem:[%s214 + $0x48] sm:$0xff] %v335
        %352 = vst [vmem:[%s214 + $0x50] sm:$0xff] %v336
        %353 = vst [vmem:[%s214 + $0x58] sm:$0xff] %v337
        %354 = vst [vmem:[%s214 + $0x60] sm:$0xff] %v338
        %355 = vst [vmem:[%s214 + $0x68] sm:$0xff] %v339
        %356 = vst [vmem:[%s214 + $0x70] sm:$0xff] %v340
        %357 = vst [vmem:[%s214 + $0x78] sm:$0xff] %v341
        %s358 = sand.u32 %s97, 1
        %s359 = scalar_lea.sflag [#allocation4], %s358
        %s360 = sand.u32 %s97, 1
        %s361 = smul.addr %s360, 128
        %s362 = scalar_lea.vmem [#allocation7], %s361
        // Predicated region
        $region41: #{tpu_custom_call.1} parent=31 // pred_check
          %p363 = pneg %p107
        $region42: #{tpu_custom_call.1} parent=31 // pred_check_branch
          %365 = sbr.rel (%p363) target = $region44
        $region43: #{tpu_custom_call.1} parent=31 // pred_region
          %s366 = smul.u32 16, %s21
          %s367 = ssub.s32 25, %s366
          %p368 = scmp.lt.s32.totalorder %s367, 16
          %s369 = scalar_select %p368, %s367, 16
          %s370 = smul.u32 8, %s369
          %s371 = ssub.s32 128, %s370
          %s372 = sshll.u32 %s371, 4
          %373 = vsyncadd %s359, %s372
          %p374 = scmp.ne.s32.totalorder 0, %s370
          %s375 = smul.addr %s366, 8
          %s376 = scalar_lea.hbm %s3, %s375
          %s377 = smul.u32 8, %s369
          %s378 = sshll.u32 %s362, 4
          %s379 = int_to_ptr.vmem [resolvable:$true] %s378
          %s380 = sshll.u32 %s376, 4
          %s381 = int_to_ptr.hbm [resolvable:$true] %s380
          %s382 = sshll.u32 %s377, 4
          %386 = dma.vmem_to_hbm [thread:$0]  (%p374), %s379, %s382, %s381, %s359, 128, 128, 8
        $region44: #{tpu_custom_call.1} parent=31 // pred_fallthru
          _
      $region32: #{tpu_custom_call.1} parent=5 // pred_fallthru
        _
      %p387 = scmp.le.s32.totalorder 2, %s16
      // Predicated region
      $region45: #{tpu_custom_call.1} parent=5 // pred_check
        %p388 = pneg %p387
      $region46: #{tpu_custom_call.1} parent=5 // pred_check_branch
        %390 = sbr.rel (%p388) target = $region48
      $region47: #{tpu_custom_call.1} parent=5 // pred_region
        %s391 = ssub.s32 %s16, 2
        // Predicated region
        $region49: #{tpu_custom_call.1} parent=47 // pred_check
          %p392 = pneg %p113
        $region50: #{tpu_custom_call.1} parent=47 // pred_check_branch
          %394 = sbr.rel (%p392) target = $region52
        $region51: #{tpu_custom_call.1} parent=47 // pred_region
          %s395 = sand.u32 %s98, 1
          %s396 = scalar_lea.sflag [#allocation4], %s395
          %s397 = sand.u32 %s98, 1
          %s398 = smul.addr %s397, 128
          %s399 = scalar_lea.vmem [#allocation7], %s398
          %401 = dma.done %s396, 2048
        $region52: #{tpu_custom_call.1} parent=47 // pred_fallthru
          _
      $region48: #{tpu_custom_call.1} parent=5 // pred_fallthru
        _
    $region6: #{tpu_custom_call.1} parent=1 // loop_footer
      %s20 = sadd.s32 1, %s16
    $region7: #{tpu_custom_call.1} parent=1 // loop_footer_branch
      %15 = sbr.rel target = $region3
    $region8: #{tpu_custom_call.1} parent=1 // loop_exit
      _
    %402 = vsyncpa [#allocation3], 1
    %s403 = scalar_lea.sflag [#allocation3], 1
    %404 = vsyncpa %s403, 1
    %405 = vsyncpa [#allocation6], 1
    %406 = vsyncpa [#allocation4], 1
    %s407 = scalar_lea.sflag [#allocation4], 1
    %408 = vsyncpa %s407, 1

// kernel: tpu_custom_call.1
$region0: #{tpu_custom_call.1}
  #allocation0 [shape = 'u32[]', space=smem, size = 0x4, offset = 0x4, fixed_abs, tag = 'smem constant byte address 0x4 - core index']
  #allocation1 [shape = 'u32[72,128]{1,0:T(1,128)}', space=vmem, size = 0x9000, scoped, tag = 'internal scratch']
  %s0 = inlined_call_operand.hbm [shape: f32[200,128], index: 0, kind: input, shape index: {}]
  %s1 = inlined_call_operand.hbm [shape: f32[128,128], index: 1, kind: input, shape index: {}]
  %s2 = inlined_call_operand.vmem [shape: f32[1,128], index: 2, kind: input, shape index: {}]
  %s3 = inlined_call_operand.hbm [shape: f32[200,128], index: 3, kind: output, shape index: {}]
  %s4 = sld [smem:[#allocation0]]
  $region53: #{tpu_custom_call.1} parent=0
    _
  %s6 = ssub.s32 1, %s4
  %s7 = scalar_select 0, %s6, %s4
  $region1: #{tpu_custom_call.1} parent=0
    #allocation2 [shape = 'u8[131072]{0}', space=vmem, size = 0x20000, scoped, tag = 'input window, operand 0']
    #allocation3 [shape = 's32[2]{0}', space=sflag, size = 0x8, scoped, tag = 'scoped memory for tpu_custom_call.1']
    #allocation4 [shape = 's32[2]{0}', space=sflag, size = 0x8, scoped, tag = 'scoped memory for tpu_custom_call.1']
    #allocation5 [shape = 'u8[65536]{0}', space=vmem, size = 0x10000, scoped, tag = 'input window, operand 1, single buffered']
    #allocation6 [shape = 's32[1]{0}', space=sflag, size = 0x4, scoped, tag = 'scoped memory for tpu_custom_call.1']
    #allocation7 [shape = 'u8[131072]{0}', space=vmem, size = 0x20000, scoped, tag = 'output window, operand 0']
    %8 = vsyncpa [#allocation3], 0
    %s9 = scalar_lea.sflag [#allocation3], 1
    %10 = vsyncpa %s9, 0
    %11 = vsyncpa [#allocation6], 0
    %12 = vsyncpa [#allocation4], 0
    %s13 = scalar_lea.sflag [#allocation4], 1
    %14 = vsyncpa %s13, 0
    loop: start=0, step=1, limit=4
    $region2: #{tpu_custom_call.1} parent=1 // loop_pre_header
      _
    $region3: #{tpu_custom_call.1} parent=1 // loop_header
      %s16 = sphi 0, %s20
      %p17 = scmp.ge.s32.totalorder %s16, 4
      %s26 = sphi 0, %s28
      %s29 = sphi 0, %s26
      %s30 = sphi 0, %s29
      %s46 = sphi 0, %s30
      %s50 = sphi 0, %s50
      %s52 = sphi 0, %s50
      %s53 = sphi 0, %s52
      %s67 = sphi 0, %s53
      %s71 = sphi 0, %s71
      %s73 = sphi 0, %s71
      %s74 = sphi 0, %s73
      %s88 = sphi 0, %s74
      %s94 = sphi 0, %s96
      %s97 = sphi 0, %s94
      %s98 = sphi 0, %s97
      %s114 = sphi 0, %s98
    $region4: #{tpu_custom_call.1} parent=1 // loop_header_branch
      %19 = sbr.rel (%p17) target = $region8
    $region5: #{tpu_custom_call.1} parent=1 // loop_body
      %s21 = ssub.s32 %s16, 1
      %s22 = ssub.s32 %s16, 2
      %s23 = sadd.s32 %s16, 1
      %s24 = ssub.s32 %s16, %s23
      %p25 = scmp.eq.s32.totalorder %s24, 0
      %s27 = sadd.s32 %s26, 1
      %s28 = scalar_select %p25, %s26, %s27
      %p31 = pneg %p25
      %p32 = scmp.eq.s32.totalorder %s16, 1
      %p33 = por %p31, %p32
      %p34 = scmp.ne.s32.totalorder %s26, %s29
      %p35 = scmp.eq.s32.totalorder %s16, 0
      %p36 = por %p34, %p35
      %p37 = scmp.ne.s32.totalorder %s26, %s29
      %p38 = scmp.eq.s32.totalorder %s21, 1
      %p39 = por %p37, %p38
      %p40 = scmp.ne.s32.totalorder %s29, %s30
      %p41 = scmp.eq.s32.totalorder %s21, 0
      %p42 = por %p40, %p41
      %p43 = scmp.ne.s32.totalorder %s29, %s30
      %p44 = scmp.eq.s32.totalorder %s22, 1
      %p45 = por %p43, %p44
      %p47 = scmp.ne.s32.totalorder %s30, %s46
      %p48 = scmp.eq.s32.totalorder %s22, 0
      %p49 = por %p47, %p48
      %s51 = sadd.s32 %s50, 1
      %p54 = scmp.eq.s32.totalorder %s16, 1
      %p55 = scmp.ne.s32.totalorder %s50, %s52
      %p56 = scmp.eq.s32.totalorder %s16, 0
      %p57 = por %p55, %p56
      %p58 = scmp.ne.s32.totalorder %s50, %s52
      %p59 = scmp.eq.s32.totalorder %s21, 1
      %p60 = por %p58, %p59
      %p61 = scmp.ne.s32.totalorder %s52, %s53
      %p62 = scmp.eq.s32.totalorder %s21, 0
      %p63 = por %p61, %p62
      %p64 = scmp.ne.s32.totalorder %s52, %s53
      %p65 = scmp.eq.s32.totalorder %s22, 1
      %p66 = por %p64, %p65
      %p68 = scmp.ne.s32.totalorder %s53, %s67
      %p69 = scmp.eq.s32.totalorder %s22, 0
      %p70 = por %p68, %p69
      %s72 = sadd.s32 %s71, 1
      %p75 = scmp.eq.s32.totalorder %s16, 1
      %p76 = scmp.ne.s32.totalorder %s71, %s73
      %p77 = scmp.eq.s32.totalorder %s16, 0
      %p78 = por %p76, %p77
      %p79 = scmp.ne.s32.totalorder %s71, %s73
      %p80 = scmp.eq.s32.totalorder %s21, 1
      %p81 = por %p79, %p80
      %p82 = scmp.ne.s32.totalorder %s73, %s74
      %p83 = scmp.eq.s32.totalorder %s21, 0
      %p84 = por %p82, %p83
      %p85 = scmp.ne.s32.totalorder %s73, %s74
      %p86 = scmp.eq.s32.totalorder %s22, 1
      %p87 = por %p85, %p86
      %p89 = scmp.ne.s32.totalorder %s74, %s88
      %p90 = scmp.eq.s32.totalorder %s22, 0
      %p91 = por %p89, %p90
      %s92 = ssub.s32 %s16, %s23
      %p93 = scmp.eq.s32.totalorder %s92, 0
      %s95 = sadd.s32 %s94, 1
      %s96 = scalar_select %p93, %s94, %s95
      %p99 = pneg %p93
      %p100 = scmp.eq.s32.totalorder %s16, 1
      %p101 = por %p99, %p100
      %p102 = scmp.ne.s32.totalorder %s94, %s97
      %p103 = scmp.eq.s32.totalorder %s16, 0
      %p104 = por %p102, %p103
      %p105 = scmp.ne.s32.totalorder %s94, %s97
      %p106 = scmp.eq.s32.totalorder %s21, 1
      %p107 = por %p105, %p106
      %p108 = scmp.ne.s32.totalorder %s97, %s98
      %p109 = scmp.eq.s32.totalorder %s21, 0
      %p110 = por %p108, %p109
      %p111 = scmp.ne.s32.totalorder %s97, %s98
      %p112 = scmp.eq.s32.totalorder %s22, 1
      %p113 = por %p111, %p112
      %p115 = scmp.ne.s32.totalorder %s98, %s114
      %p116 = scmp.eq.s32.totalorder %s22, 0
      %p117 = por %p115, %p116
      %p118 = scmp.le.s32.totalorder 1, %s16
      %p119 = scmp.lt.s32.totalorder %s16, 3
      %p120 = pnand %p118, %p119
      %p121 = pneg %p120
      // Predicated region
      $region9: #{tpu_custom_call.1} parent=5 // pred_check
        _
      $region10: #{tpu_custom_call.1} parent=5 // pred_check_branch
        %123 = sbr.rel (%p120) target = $region12
      $region11: #{tpu_custom_call.1} parent=5 // pred_region
        %s124 = ssub.s32 %s16, 1
        // Predicated region
        $region13: #{tpu_custom_call.1} parent=11 // pred_check
          %p125 = pneg %p63
        $region14: #{tpu_custom_call.1} parent=11 // pred_check_branch
          %127 = sbr.rel (%p125) target = $region16
        $region15: #{tpu_custom_call.1} parent=11 // pred_region
          %129 = vsyncadd [#allocation6], 0
          %s130 = sshll.u32 %s1, 4
          %s131 = int_to_ptr.hbm [resolvable:$true] %s130
          %s132 = sshll.u32 [#allocation5], 4
          %s133 = int_to_ptr.vmem [resolvable:$true] %s132
          %138 = dma.hbm_to_vmem [thread:$0]  %s131, 2048, %s133, [#allocation6], 128, 128, 8
        $region16: #{tpu_custom_call.1} parent=11 // pred_fallthru
          _
        // Predicated region
        $region17: #{tpu_custom_call.1} parent=11 // pred_check
          %p139 = pneg %p84
        $region18: #{tpu_custom_call.1} parent=11 // pred_check_branch
          %141 = sbr.rel (%p139) target = $region20
        $region19: #{tpu_custom_call.1} parent=11 // pred_region
          _
        $region20: #{tpu_custom_call.1} parent=11 // pred_fallthru
          _
      $region12: #{tpu_custom_call.1} parent=5 // pred_fallthru
        _
      %p142 = scmp.lt.s32.totalorder %s16, 2
      // Predicated region
      $region21: #{tpu_custom_call.1} parent=5 // pred_check
        %p143 = pneg %p142
      $region22: #{tpu_custom_call.1} parent=5 // pred_check_branch
        %145 = sbr.rel (%p143) target = $region24
      $region23: #{tpu_custom_call.1} parent=5 // pred_region
        // Predicated region
        $region25: #{tpu_custom_call.1} parent=23 // pred_check
          %p146 = pneg %p36
        $region26: #{tpu_custom_call.1} parent=23 // pred_check_branch
          %148 = sbr.rel (%p146) target = $region28
        $region27: #{tpu_custom_call.1} parent=23 // pred_region
          %s149 = sand.u32 %s26, 1
          %s150 = scalar_lea.sflag [#allocation3], %s149
          %s151 = sand.u32 %s26, 1
          %s152 = smul.addr %s151, 128
          %s153 = scalar_lea.vmem [#allocation2], %s152
          %s154 = smul.u32 16, %s16
          %s155 = ssub.s32 25, %s154
          %p156 = scmp.lt.s32.totalorder %s155, 16
          %s157 = scalar_select %p156, %s155, 16
          %s158 = smul.u32 8, %s157
          %s159 = ssub.s32 128, %s158
          %s160 = sshll.u32 %s159, 4
          %161 = vsyncadd %s150, %s160
          %p162 = scmp.ne.s32.totalorder 0, %s158
          %s163 = smul.addr %s154, 8
          %s164 = scalar_lea.hbm %s0, %s163
          %s165 = smul.u32 8, %s157
          %s166 = sshll.u32 %s164, 4
          %s167 = int_to_ptr.hbm [resolvable:$true] %s166
          %s168 = sshll.u32 %s153, 4
          %s169 = int_to_ptr.vmem [resolvable:$true] %s168
          %s170 = sshll.u32 %s165, 4
          %174 = dma.hbm_to_vmem [thread:$0]  (%p162), %s167, %s170, %s169, %s150, 128, 128, 8
        $region28: #{tpu_custom_call.1} parent=23 // pred_fallthru
          _
      $region24: #{tpu_custom_call.1} parent=5 // pred_fallthru
        _
      %p175 = scmp.le.s32.totalorder 1, %s16
      %p176 = scmp.lt.s32.totalorder %s16, 3
      %p177 = pnand %p175, %p176
      %p178 = pneg %p177
      // Predicated region
      $region29: #{tpu_custom_call.1} parent=5 // pred_check
        _
      $region30: #{tpu_custom_call.1} parent=5 // pred_check_branch
        %180 = sbr.rel (%p177) target = $region32
      $region31: #{tpu_custom_call.1} parent=5 // pred_region
        %s181 = ssub.s32 %s16, 1
        %s182 = sand.u32 %s29, 1
        %s183 = scalar_lea.sflag [#allocation3], %s182
        %s184 = sand.u32 %s29, 1
        %s185 = smul.addr %s184, 128
        %s186 = scalar_lea.vmem [#allocation2], %s185
        // Predicated region
        $region33: #{tpu_custom_call.1} parent=31 // pred_check
          %p187 = pneg %p42
        $region34: #{tpu_custom_call.1} parent=31 // pred_check_branch
          %189 = sbr.rel (%p187) target = $region36
        $region35: #{tpu_custom_call.1} parent=31 // pred_region
          %191 = dma.done %s183, 2048
        $region36: #{tpu_custom_call.1} parent=31 // pred_fallthru
          _
        // Predicated region
        $region37: #{tpu_custom_call.1} parent=31 // pred_check
          %p192 = pneg %p63
        $region38: #{tpu_custom_call.1} parent=31 // pred_check_branch
          %194 = sbr.rel (%p192) target = $region40
        $region39: #{tpu_custom_call.1} parent=31 // pred_region
          %196 = dma.done [#allocation6], 2048
        $region40: #{tpu_custom_call.1} parent=31 // pred_fallthru
          _
        %s197 = sand.u32 %s29, 1
        %s198 = scalar_lea.sflag [#allocation3], %s197
        %s199 = sand.u32 %s29, 1
        %s200 = smul.addr %s199, 128
        %s201 = scalar_lea.vmem [#allocation2], %s200
        %p202 = pneg %p42
        %p203 = pneg %p39
        %p204 = pneg %p63
        %p205 = pneg %p60
        %p206 = pneg %p84
        %p207 = pneg %p81
        %p208 = pneg %p110
        %p209 = pneg %p107
        %s210 = sand.u32 %s97, 1
        %s211 = scalar_lea.sflag [#allocation4], %s210
        %s212 = sand.u32 %s97, 1
        %s213 = smul.addr %s212, 128
        %s214 = scalar_lea.vmem [#allocation7], %s213
        %s215 = smul.u32 16, %s21
        %s216 = ssub.s32 25, %s215
        %p217 = scmp.lt.s32.totalorder %s216, 16
        %s218 = scalar_select %p217, %s216, 16
        %s219 = smul.u32 8, %s218
        %s220 = smul.u32 16, %s21
        %s221 = ssub.s32 25, %s220
        %p222 = scmp.lt.s32.totalorder %s221, 16
        %s223 = scalar_select %p222, %s221, 16
        %s224 = smul.u32 8, %s223
        %v225 = vld [vmem:[%s186] sm:$0xff]
        %v226 = vld [vmem:[%s186 + $0x8] sm:$0xff]
        %v227 = vld [vmem:[%s186 + $0x10] sm:$0xff]
        %v228 = vld [vmem:[%s186 + $0x18] sm:$0xff]
        %v229 = vld [vmem:[%s186 + $0x20] sm:$0xff]
        %v230 = vld [vmem:[%s186 + $0x28] sm:$0xff]
        %v231 = vld [vmem:[%s186 + $0x30] sm:$0xff]
        %v232 = vld [vmem:[%s186 + $0x38] sm:$0xff]
        %v233 = vld [vmem:[%s186 + $0x40] sm:$0xff]
        %v234 = vld [vmem:[%s186 + $0x48] sm:$0xff]
        %v235 = vld [vmem:[%s186 + $0x50] sm:$0xff]
        %v236 = vld [vmem:[%s186 + $0x58] sm:$0xff]
        %v237 = vld [vmem:[%s186 + $0x60] sm:$0xff]
        %v238 = vld [vmem:[%s186 + $0x68] sm:$0xff]
        %v239 = vld [vmem:[%s186 + $0x70] sm:$0xff]
        %v240 = vld [vmem:[%s186 + $0x78] sm:$0xff]
        %v241 = vld [vmem:[#allocation5] sm:$0xff]
        %v242 = vld [vmem:[#allocation5 + $0x8] sm:$0xff]
        %v243 = vld [vmem:[#allocation5 + $0x10] sm:$0xff]
        %v244 = vld [vmem:[#allocation5 + $0x18] sm:$0xff]
        %v245 = vld [vmem:[#allocation5 + $0x20] sm:$0xff]
        %v246 = vld [vmem:[#allocation5 + $0x28] sm:$0xff]
        %v247 = vld [vmem:[#allocation5 + $0x30] sm:$0xff]
        %v248 = vld [vmem:[#allocation5 + $0x38] sm:$0xff]
        %v249 = vld [vmem:[#allocation5 + $0x40] sm:$0xff]
        %v250 = vld [vmem:[#allocation5 + $0x48] sm:$0xff]
        %v251 = vld [vmem:[#allocation5 + $0x50] sm:$0xff]
        %v252 = vld [vmem:[#allocation5 + $0x58] sm:$0xff]
        %v253 = vld [vmem:[#allocation5 + $0x60] sm:$0xff]
        %v254 = vld [vmem:[#allocation5 + $0x68] sm:$0xff]
        %v255 = vld [vmem:[#allocation5 + $0x70] sm:$0xff]
        %v256 = vld [vmem:[#allocation5 + $0x78] sm:$0xff]
        %v257 = vld [vmem:[%s2] sm:$0x1]
        %v259 = vperm.slane %v257, 0
        %261 = vmatpush.msra.mxu0 %v256
        %262 = vmatpush.msra.mxu0 %v255
        %263 = vmatpush.msra.mxu0 %v254
        %264 = vmatpush.msra.mxu0 %v253
        %265 = vmatpush.msra.mxu0 %v252
        %266 = vmatpush.msra.mxu0 %v251
        %267 = vmatpush.msra.mxu0 %v250
        %268 = vmatpush.msra.mxu0 %v249
        %269 = vmatpush.msra.mxu0 %v248
        %270 = vmatpush.msra.mxu0 %v247
        %271 = vmatpush.msra.mxu0 %v246
        %272 = vmatpush.msra.mxu0 %v245
        %273 = vmatpush.msra.mxu0 %v244
        %274 = vmatpush.msra.mxu0 %v243
        %275 = vmatpush.msra.mxu0 %v242
        %276 = vmatpush.msra.mxu0 %v241
        %277 = vmatmul.f32.gmra.mxu0 %v225
        %v278 = vpop.f32.mrf.mxu0
        %v279 = vadd.f32 %v259, %v278
        %280 = vmatmul.f32.gmra.mxu0 %v226
        %v281 = vpop.f32.mrf.mxu0
        %v282 = vadd.f32 %v259, %v281
        %283 = vmatmul.f32.gmra.mxu0 %v227
        %v284 = vpop.f32.mrf.mxu0
        %v285 = vadd.f32 %v259, %v284
        %286 = vmatmul.f32.gmra.mxu0 %v228
        %v287 = vpop.f32.mrf.mxu0
        %v288 = vadd.f32 %v259, %v287
        %289 = vmatmul.f32.gmra.mxu0 %v229
        %v290 = vpop.f32.mrf.mxu0
        %v291 = vadd.f32 %v259, %v290
        %292 = vmatmul.f32.gmra.mxu0 %v230
        %v293 = vpop.f32.mrf.mxu0
        %v294 = vadd.f32 %v259, %v293
        %295 = vmatmul.f32.gmra.mxu0 %v231
        %v296 = vpop.f32.mrf.mxu0
        %v297 = vadd.f32 %v259, %v296
        %298 = vmatmul.f32.gmra.mxu0 %v232
        %v299 = vpop.f32.mrf.mxu0
        %v300 = vadd.f32 %v259, %v299
        %301 = vmatmul.f32.gmra.mxu0 %v233
        %v302 = vpop.f32.mrf.mxu0
        %v303 = vadd.f32 %v259, %v302
        %304 = vmatmul.f32.gmra.mxu0 %v234
        %v305 = vpop.f32.mrf.mxu0
        %v306 = vadd.f32 %v259, %v305
        %307 = vmatmul.f32.gmra.mxu0 %v235
        %v308 = vpop.f32.mrf.mxu0
        %v309 = vadd.f32 %v259, %v308
        %310 = vmatmul.f32.gmra.mxu0 %v236
        %v311 = vpop.f32.mrf.mxu0
        %v312 = vadd.f32 %v259, %v311
        %313 = vmatmul.f32.gmra.mxu0 %v237
        %v314 = vpop.f32.mrf.mxu0
        %v315 = vadd.f32 %v259, %v314
        %316 = vmatmul.f32.gmra.mxu0 %v238
        %v317 = vpop.f32.mrf.mxu0
        %v318 = vadd.f32 %v259, %v317
        %319 = vmatmul.f32.gmra.mxu0 %v239
        %v320 = vpop.f32.mrf.mxu0
        %v321 = vadd.f32 %v259, %v320
        %322 = vmatmul.f32.gmra.mxu0 %v240
        %v323 = vpop.f32.mrf.mxu0
        %v324 = vadd.f32 %v259, %v323
        %325 = vdwg.mxu0
        %v326 = vadd.f32 %v225, %v279
        %v327 = vadd.f32 %v226, %v282
        %v328 = vadd.f32 %v227, %v285
        %v329 = vadd.f32 %v228, %v288
        %v330 = vadd.f32 %v229, %v291
        %v331 = vadd.f32 %v230, %v294
        %v332 = vadd.f32 %v231, %v297
        %v333 = vadd.f32 %v232, %v300
        %v334 = vadd.f32 %v233, %v303
        %v335 = vadd.f32 %v234, %v306
        %v336 = vadd.f32 %v235, %v309
        %v337 = vadd.f32 %v236, %v312
        %v338 = vadd.f32 %v237, %v315
        %v339 = vadd.f32 %v238, %v318
        %v340 = vadd.f32 %v239, %v321
        %v341 = vadd.f32 %v240, %v324
        %342 = vst [vmem:[%s214] sm:$0xff] %v326
        %343 = vst [vmem:[%s214 + $0x8] sm:$0xff] %v327
        %344 = vst [vmem:[%s214 + $0x10] sm:$0xff] %v328
        %345 = vst [vmem:[%s214 + $0x18] sm:$0xff] %v329
        %346 = vst [vmem:[%s214 + $0x20] sm:$0xff] %v330
        %347 = vst [vmem:[%s214 + $0x28] sm:$0xff] %v331
        %348 = vst [vmem:[%s214 + $0x30] sm:$0xff] %v332
        %349 = vst [vmem:[%s214 + $0x38] sm:$0xff] %v333
        %350 = vst [vmem:[%s214 + $0x40] sm:$0xff] %v334
        %351 = vst [vmem:[%s214 + $0x48] sm:$0xff] %v335
        %352 = vst [vmem:[%s214 + $0x50] sm:$0xff] %v336
        %353 = vst [vmem:[%s214 + $0x58] sm:$0xff] %v337
        %354 = vst [vmem:[%s214 + $0x60] sm:$0xff] %v338
        %355 = vst [vmem:[%s214 + $0x68] sm:$0xff] %v339
        %356 = vst [vmem:[%s214 + $0x70] sm:$0xff] %v340
        %357 = vst [vmem:[%s214 + $0x78] sm:$0xff] %v341
        %s358 = sand.u32 %s97, 1
        %s359 = scalar_lea.sflag [#allocation4], %s358
        %s360 = sand.u32 %s97, 1
        %s361 = smul.addr %s360, 128
        %s362 = scalar_lea.vmem [#allocation7], %s361
        // Predicated region
        $region41: #{tpu_custom_call.1} parent=31 // pred_check
          %p363 = pneg %p107
        $region42: #{tpu_custom_call.1} parent=31 // pred_check_branch
          %365 = sbr.rel (%p363) target = $region44
        $region43: #{tpu_custom_call.1} parent=31 // pred_region
          %s366 = smul.u32 16, %s21
          %s367 = ssub.s32 25, %s366
          %p368 = scmp.lt.s32.totalorder %s367, 16
          %s369 = scalar_select %p368, %s367, 16
          %s370 = smul.u32 8, %s369
          %s371 = ssub.s32 128, %s370
          %s372 = sshll.u32 %s371, 4
          %373 = vsyncadd %s359, %s372
          %p374 = scmp.ne.s32.totalorder 0, %s370
          %s375 = smul.addr %s366, 8
          %s376 = scalar_lea.hbm %s3, %s375
          %s377 = smul.u32 8, %s369
          %s378 = sshll.u32 %s362, 4
          %s379 = int_to_ptr.vmem [resolvable:$true] %s378
          %s380 = sshll.u32 %s376, 4
          %s381 = int_to_ptr.hbm [resolvable:$true] %s380
          %s382 = sshll.u32 %s377, 4
          %386 = dma.vmem_to_hbm [thread:$0]  (%p374), %s379, %s382, %s381, %s359, 128, 128, 8
        $region44: #{tpu_custom_call.1} parent=31 // pred_fallthru
          _
      $region32: #{tpu_custom_call.1} parent=5 // pred_fallthru
        _
      %p387 = scmp.le.s32.totalorder 2, %s16
      // Predicated region
      $region45: #{tpu_custom_call.1} parent=5 // pred_check
        %p388 = pneg %p387
      $region46: #{tpu_custom_call.1} parent=5 // pred_check_branch
        %390 = sbr.rel (%p388) target = $region48
      $region47: #{tpu_custom_call.1} parent=5 // pred_region
        %s391 = ssub.s32 %s16, 2
        // Predicated region
        $region49: #{tpu_custom_call.1} parent=47 // pred_check
          %p392 = pneg %p113
        $region50: #{tpu_custom_call.1} parent=47 // pred_check_branch
          %394 = sbr.rel (%p392) target = $region52
        $region51: #{tpu_custom_call.1} parent=47 // pred_region
          %s395 = sand.u32 %s98, 1
          %s396 = scalar_lea.sflag [#allocation4], %s395
          %s397 = sand.u32 %s98, 1
          %s398 = smul.addr %s397, 128
          %s399 = scalar_lea.vmem [#allocation7], %s398
          %401 = dma.done %s396, 2048
        $region52: #{tpu_custom_call.1} parent=47 // pred_fallthru
          _
      $region48: #{tpu_custom_call.1} parent=5 // pred_fallthru
        _
    $region6: #{tpu_custom_call.1} parent=1 // loop_footer
      %s20 = sadd.s32 1, %s16
    $region7: #{tpu_custom_call.1} parent=1 // loop_footer_branch
      %15 = sbr.rel target = $region3
    $region8: #{tpu_custom_call.1} parent=1 // loop_exit
      _
    %402 = vsyncpa [#allocation3], 1
    %s403 = scalar_lea.sflag [#allocation3], 1
    %404 = vsyncpa %s403, 1
    %405 = vsyncpa [#allocation6], 1
    %406 = vsyncpa [#allocation4], 1
    %s407 = scalar_lea.sflag [#allocation4], 1
    %408 = vsyncpa %s407, 1

</llo_original>
